<compile_context>
chip_gen: v6e
topology: v6e:2x2x1
jax: 0.10.0
libtpu: 0.0.40
codegen_flags: <defaults>
</compile_context>

<pallas_src>
import functools

import jax
import jax.numpy as jnp
from jax.experimental import pallas as pl
from jax.experimental.pallas import tpu as pltpu

LANES = 128
SUBLANES = 8


def _tpu_config():
    """Return (block_rows, core_splits) tuned per TPU generation.

    block_rows is the largest input block whose double-buffered working set
    (2 inputs x 2 buffers x block bytes) stays comfortably under the chip's
    default scoped-VMEM limit; core_splits is 2 only on 2-TensorCore chips
    (v7x) — on single-TC chips a leading "parallel" axis is just a serial
    loop plus wasted duplicate-block DMA.
    """
    kind = ""
    try:
        kind = jax.devices()[0].device_kind.lower()
    except Exception:  # defensive (interpret mode, odd backends)
        pass
    if "v7" in kind:
        # 4 MiB blocks -> 16 MiB pipelined working set (< 32 MiB scoped VMEM);
        # amortizes the ~0.35us per-grid-step overhead at ~3.2 TB/s HBM.
        return 8192, 2
    if "v6" in kind:
        # 1 TC; 2 MiB blocks already sit near the 1.4 TB/s roofline.
        return 4096, 1
    if "v5 lite" in kind or "v5e" in kind or "v5lite" in kind:
        # 2 MiB blocks -> 8 MiB working set, under v5e's 16 MiB scoped VMEM.
        return 4096, 1
    # Unknown chip: conservative defaults.
    return 2048, 1


def _mse_single_kernel(x_ref, t_ref, loss_ref, *, total_elems):
    """Whole array in one block: one DMA in, one scalar out."""
    d = x_ref[...].astype(jnp.float32) - t_ref[...].astype(jnp.float32)
    loss_ref[0, 0] = jnp.sum(d * d) / jnp.float32(total_elems)


def _mse_partial_kernel(x_ref, t_ref, acc_ref, *, block_rows, rows_valid,
                        steps_per_split, full_blocks, need_gate):
    """Tiled path: fold each (block_rows,128) tile into a resident (8,128)
    VMEM accumulator with VPU adds only.  Full blocks accumulate unmasked;
    only the tail / overshoot blocks (scalar-gated) pay the row mask."""
    c = pl.program_id(0)   # core split ("parallel")
    i = pl.program_id(1)   # reduction step ("arbitrary")

    @pl.when(i == 0)
    def _():
        acc_ref[...] = jnp.zeros_like(acc_ref)

    d = x_ref[...].astype(jnp.float32) - t_ref[...].astype(jnp.float32)
    dsq = d * d

    def fold(v):
        # (block_rows,128) -> (block_rows//8, 8, 128) is a pure major-dim
        # split; summing axis 0 is elementwise VPU adds into (8,128).
        acc_ref[...] += jnp.sum(
            v.reshape(block_rows // SUBLANES, SUBLANES, LANES), axis=0)

    if not need_gate:
        # Grid exactly covers the array with full blocks: no mask anywhere.
        fold(dsq)
    else:
        blk = c * steps_per_split + i   # logical (unclamped) block index

        @pl.when(blk < full_blocks)     # steady state: full block, no mask
        def _():
            fold(dsq)

        @pl.when(blk >= full_blocks)    # partial tail / clamped duplicate
        def _():
            row0 = blk * block_rows
            rid = row0 + jax.lax.broadcasted_iota(
                jnp.int32, (block_rows, LANES), 0)
            fold(jnp.where(rid < rows_valid, dsq, 0.0))


def content_loss_forward(x, target):
    """Pallas equivalent of ContentLoss.forward.

    Returns (output, loss): output is `x` passed through unchanged (matching
    the PyTorch module's return value) and loss == mse(x, target).
    """
    assert x.shape == target.shape, "input and target must have the same shape"
    n = 1
    for s in x.shape:
        n *= int(s)

    block_rows, core_splits = _tpu_config()
    single_block_max_rows = block_rows   # grid-free path up to one full block

    # Lane-dense (rows, 128) slab.  Common case (conv feature maps): element
    # count divisible by 128 -> plain reshape, no extra HBM copy from padding.
    if n % LANES == 0:
        rows = n // LANES
        x2 = jnp.reshape(x, (rows, LANES))
        t2 = jnp.reshape(target, (rows, LANES))
    else:
        # Rare misaligned case: pad the flat tail with zeros (both operands),
        # which contributes 0 to the sum; divide by the true element count.
        rows = pl.cdiv(n, LANES)
        pad = rows * LANES - n
        x2 = jnp.pad(jnp.reshape(x, (-1,)), (0, pad)).reshape(rows, LANES)
        t2 = jnp.pad(jnp.reshape(target, (-1,)), (0, pad)).reshape(rows, LANES)

    if rows <= single_block_max_rows:
        # Small/medium tensor: single block == full array (lifts the (8,128)
        # divisibility requirement), no accumulator residency, no masking.
        loss = pl.pallas_call(
            functools.partial(_mse_single_kernel, total_elems=n),
            out_shape=jax.ShapeDtypeStruct((1, 1), jnp.float32),
            grid_spec=pltpu.PrefetchScalarGridSpec(
                num_scalar_prefetch=0,
                grid=(1,),
                in_specs=[
                    pl.BlockSpec((rows, LANES), lambda i: (0, 0)),
                    pl.BlockSpec((rows, LANES), lambda i: (0, 0)),
                ],
                out_specs=pl.BlockSpec(memory_space=pltpu.MemorySpace.SMEM),
            ),
            compiler_params=pltpu.CompilerParams(
                dimension_semantics=("arbitrary",)),
        )(x2, t2)
        return x, loss[0, 0]

    # Large tensor: tiled HBM-bound reduction.
    num_blocks = pl.cdiv(rows, block_rows)
    # Split across TensorCores only when each core gets >= 2 real blocks;
    # otherwise the split just burns HBM bandwidth on duplicate blocks.
    splits = core_splits if num_blocks >= 2 * core_splits else 1
    steps = pl.cdiv(num_blocks, splits)
    full_blocks = rows // block_rows                       # unmasked blocks
    need_gate = (splits * steps * block_rows) != rows      # tail or overshoot
    needs_clamp = (splits * steps) > num_blocks            # overshoot only
    last_block = num_blocks - 1

    if needs_clamp:
        def block_map(c, i):
            # Keep the DMA in range; the duplicate block is zeroed in-kernel.
            return (jnp.minimum(c * steps + i, last_block), 0)
    else:
        def block_map(c, i):
            return (c * steps + i, 0)

    partials = pl.pallas_call(
        functools.partial(
            _mse_partial_kernel,
            block_rows=block_rows,
            rows_valid=rows,
            steps_per_split=steps,
            full_blocks=full_blocks,
            need_gate=need_gate,
        ),
        out_shape=jax.ShapeDtypeStruct((splits * SUBLANES, LANES), jnp.float32),
        grid_spec=pltpu.PrefetchScalarGridSpec(
            num_scalar_prefetch=0,
            grid=(splits, steps),
            in_specs=[
                pl.BlockSpec((block_rows, LANES), block_map),
                pl.BlockSpec((block_rows, LANES), block_map),
            ],
            # Each core split owns its own (8,128) partial-sum row, resident
            # in VMEM across the "arbitrary" reduction axis.
            out_specs=pl.BlockSpec((SUBLANES, LANES), lambda c, i: (c, 0)),
        ),
        compiler_params=pltpu.CompilerParams(
            dimension_semantics=("parallel", "arbitrary")),
    )(x2, t2)

    # Single final cross-lane reduction + mean, done once in the wrapper.
    loss = jnp.sum(partials) / jnp.float32(n)
    return x, loss


if __name__ == "__main__":
    key = jax.random.PRNGKey(0)
    k1, k2, k3, k4, k5, k6, k7, k8 = jax.random.split(key, 8)

    # 1) Small NCHW feature map (single-block path), matches the module spec.
    x = jax.random.normal(k1, (2, 4, 16, 16), dtype=jnp.float32)
    target = jax.random.normal(k2, (2, 4, 16, 16), dtype=jnp.float32)
    out, loss = content_loss_forward(x, target)
    out = jax.block_until_ready(out)
    loss = jax.block_until_ready(loss)
    ref = jnp.mean((x - target) ** 2)
    assert jnp.allclose(loss, ref, rtol=1e-5, atol=1e-6), (loss, ref)
    assert jnp.array_equal(out, x)

    # 2) Misaligned element count -> exercises the padded fallback path.
    xm = jax.random.normal(k3, (2, 3, 15, 17), dtype=jnp.float32)
    tm = jax.random.normal(k4, (2, 3, 15, 17), dtype=jnp.float32)
    outm, lossm = content_loss_forward(xm, tm)
    lossm = jax.block_until_ready(lossm)
    refm = jnp.mean((xm - tm) ** 2)
    assert jnp.allclose(lossm, refm, rtol=1e-5, atol=1e-6), (lossm, refm)

    # 3) Larger map (rows=8320 > block_rows on every generation) -> tiled path
    #    with a partial tail block (gated mask on the last step only).
    xb = jax.random.normal(k5, (2, 128, 65, 64), dtype=jnp.float32)
    tb = jax.random.normal(k6, (2, 128, 65, 64), dtype=jnp.float32)
    outb, lossb = content_loss_forward(xb, tb)
    lossb = jax.block_until_ready(lossb)
    refb = jnp.mean((xb - tb) ** 2)
    assert jnp.allclose(lossb, refb, rtol=1e-4, atol=1e-6), (lossb, refb)
    assert jnp.array_equal(outb, xb)

    # 4) Exact multiple of the generation's block size -> tiled path with no
    #    gate, no clamp, fully unmasked steady state.
    br, _ = _tpu_config()
    xe = jax.random.normal(k7, (2 * br, LANES), dtype=jnp.float32)
    te = jax.random.normal(k8, (2 * br, LANES), dtype=jnp.float32)
    oute, losse = content_loss_forward(xe, te)
    losse = jax.block_until_ready(losse)
    refe = jnp.mean((xe - te) ** 2)
    assert jnp.allclose(losse, refe, rtol=1e-4, atol=1e-6), (losse, refe)

    print("KERNEL_OK")
</pallas_src>

<mosaic_0001>
module attributes {stable_mosaic.version = 11 : i64} {
  func.func @_mse_single_kernel(%arg0: i32, %arg1: memref<16x128xf32, #tpu.memory_space<vmem>>, %arg2: memref<16x128xf32, #tpu.memory_space<vmem>>, %arg3: memref<1x1xf32, #tpu.memory_space<smem>>) attributes {dimension_semantics = [#tpu.dimension_semantics<arbitrary>], iteration_bounds = array<i64: 1>, scalar_prefetch = 0 : i64, scratch_operands = 0 : i64, tpu.core_type = #tpu.core_type<tc>, window_params = [{pipeline_mode = #tpu.pipeline_mode<synchronous>, transform_indices = @transform_0, window_bounds = array<i64: 16, 128>}, {pipeline_mode = #tpu.pipeline_mode<synchronous>, transform_indices = @transform_1, window_bounds = array<i64: 16, 128>}, {transform_indices = @transform_2, window_bounds = array<i64: 1, 1>}]} {
    %c0 = arith.constant 0 : index
    %c0_0 = arith.constant 0 : index
    %0 = vector.load %arg1[%c0, %c0_0] : memref<16x128xf32, #tpu.memory_space<vmem>>, vector<16x128xf32>
    %c0_1 = arith.constant 0 : index
    %c0_2 = arith.constant 0 : index
    %1 = vector.load %arg2[%c0_1, %c0_2] : memref<16x128xf32, #tpu.memory_space<vmem>>, vector<16x128xf32>
    %2 = arith.subf %0, %1 : vector<16x128xf32>
    %3 = arith.mulf %2, %2 : vector<16x128xf32>
    %4 = vector.shape_cast %3 : vector<16x128xf32> to vector<1x16x128xf32>
    %cst = arith.constant dense<0.000000e+00> : vector<1xf32>
    %5 = vector.multi_reduction <add>, %4, %cst [1, 2] : vector<1x16x128xf32> to vector<1xf32>
    %6 = vector.shape_cast %5 : vector<1xf32> to vector<1x1x1xf32>
    %7 = vector.extract %6[0, 0, 0] : f32 from vector<1x1x1xf32>
    %cst_3 = arith.constant 2.048000e+03 : f32
    %8 = arith.divf %7, %cst_3 : f32
    %c0_4 = arith.constant 0 : index
    %c0_5 = arith.constant 0 : index
    %9 = memref.load %arg3[%c0_4, %c0_5] : memref<1x1xf32, #tpu.memory_space<smem>>
    memref.store %8, %arg3[%c0_4, %c0_5] : memref<1x1xf32, #tpu.memory_space<smem>>
    return
  }
  func.func @transform_0(%arg0: i32) -> (i32, i32) {
    %c0_i32 = arith.constant 0 : i32
    %c0_i32_0 = arith.constant 0 : i32
    %c0_i32_1 = arith.constant 0 : i32
    return %c0_i32, %c0_i32_0 : i32, i32
  }
  func.func @transform_1(%arg0: i32) -> (i32, i32) {
    %c0_i32 = arith.constant 0 : i32
    %c0_i32_0 = arith.constant 0 : i32
    %c0_i32_1 = arith.constant 0 : i32
    return %c0_i32, %c0_i32_0 : i32, i32
  }
  func.func @transform_2(%arg0: i32) -> (i32, i32) {
    %c0_i32 = arith.constant 0 : i32
    %c0_i32_0 = arith.constant 0 : i32
    %c0_i32_1 = arith.constant 0 : i32
    return %c0_i32, %c0_i32_0 : i32, i32
  }
}

</mosaic_0001>

<llo_original>
// kernel: tpu_custom_call.1
$region0: #{tpu_custom_call.1}
  #allocation0 [shape = 'u32[]', space=smem, size = 0x4, offset = 0x4, fixed_abs, tag = 'smem constant byte address 0x4 - core index']
  #allocation1 [shape = 'u32[144,128]{1,0:T(1,128)}', space=vmem, size = 0x12000, scoped, tag = 'internal scratch']
  %s0 = inlined_call_operand.hbm [shape: f32[16,128], index: 0, kind: input, shape index: {}]
  %s1 = inlined_call_operand.hbm [shape: f32[16,128], index: 1, kind: input, shape index: {}]
  %s2 = inlined_call_operand.hbm [shape: f32[1,1], index: 2, kind: output, shape index: {}]
  %s3 = sld [smem:[#allocation0]]
  $region26: #{tpu_custom_call.1} parent=0
    _
  %s5 = ssub.s32 1, %s3
  %s6 = scalar_select 0, %s5, %s3
  $region1: #{tpu_custom_call.1} parent=0
    #allocation2 [shape = 'u8[8192]{0}', space=vmem, size = 0x2000, scoped, tag = 'input window, operand 0, single buffered']
    #allocation3 [shape = 's32[1]{0}', space=sflag, size = 0x4, scoped, tag = 'scoped memory for tpu_custom_call.1']
    #allocation4 [shape = 's32[1]{0}', space=sflag, size = 0x4, scoped, tag = 'scoped memory for tpu_custom_call.1']
    #allocation5 [shape = 'u8[8192]{0}', space=vmem, size = 0x2000, scoped, tag = 'input window, operand 1, single buffered']
    #allocation6 [shape = 's32[1]{0}', space=sflag, size = 0x4, scoped, tag = 'scoped memory for tpu_custom_call.1']
    #allocation7 [shape = 'u8[512]{0}', space=smem, size = 0x200, scoped, tag = 'output window, operand 0, single buffered']
    %7 = vsyncpa [#allocation3], 0
    %8 = vsyncpa [#allocation6], 0
    %9 = vsyncpa [#allocation4], 0
    // Predicated region
    $region2: #{tpu_custom_call.1} parent=1 // pred_check
      _
    $region3: #{tpu_custom_call.1} parent=1 // pred_check_branch
      %11 = sbr.rel (0) target = $region5
    $region4: #{tpu_custom_call.1} parent=1 // pred_region
      %s13 = ssub.s32 256, 256
      %14 = vsyncadd [#allocation3], %s13
      %s15 = sshll.u32 [#allocation2], 4
      %s16 = int_to_ptr.vmem [resolvable:$true] %s15
      %21 = dma.hbm_to_vmem [thread:$0]  %s0, 256, %s16, [#allocation3], 128, 128, 8
    $region5: #{tpu_custom_call.1} parent=1 // pred_fallthru
      _
    // Predicated region
    $region6: #{tpu_custom_call.1} parent=1 // pred_check
      _
    $region7: #{tpu_custom_call.1} parent=1 // pred_check_branch
      %23 = sbr.rel (0) target = $region9
    $region8: #{tpu_custom_call.1} parent=1 // pred_region
      %s25 = ssub.s32 256, 256
      %26 = vsyncadd [#allocation6], %s25
      %s27 = sshll.u32 [#allocation5], 4
      %s28 = int_to_ptr.vmem [resolvable:$true] %s27
      %33 = dma.hbm_to_vmem [thread:$0]  %s1, 256, %s28, [#allocation6], 128, 128, 8
    $region9: #{tpu_custom_call.1} parent=1 // pred_fallthru
      _
    // Predicated region
    $region10: #{tpu_custom_call.1} parent=1 // pred_check
      _
    $region11: #{tpu_custom_call.1} parent=1 // pred_check_branch
      %35 = sbr.rel (0) target = $region13
    $region12: #{tpu_custom_call.1} parent=1 // pred_region
      %36 = dma.done [#allocation3], 256
    $region13: #{tpu_custom_call.1} parent=1 // pred_fallthru
      _
    // Predicated region
    $region14: #{tpu_custom_call.1} parent=1 // pred_check
      _
    $region15: #{tpu_custom_call.1} parent=1 // pred_check_branch
      %38 = sbr.rel (0) target = $region17
    $region16: #{tpu_custom_call.1} parent=1 // pred_region
      %39 = dma.done [#allocation6], 256
    $region17: #{tpu_custom_call.1} parent=1 // pred_fallthru
      _
    %v40 = vld [vmem:[#allocation2] sm:$0xff]
    %v41 = vld [vmem:[#allocation2 + $0x8] sm:$0xff]
    %v42 = vld [vmem:[#allocation5] sm:$0xff]
    %v43 = vld [vmem:[#allocation5 + $0x8] sm:$0xff]
    %v44 = vsub.f32 %v40, %v42
    %v45 = vsub.f32 %v41, %v43
    %v46 = vmul.f32 %v44, %v44
    %v47 = vmul.f32 %v45, %v45
    %v48 = vadd.f32 %v46, %v47
    %49 = vadd.xlane.f32.xlu0 %v48
    %v50 = vpop.xlane.xlu0 %49
    %v51 = vrot.slane %v50, 4
    %v52 = vadd.f32 %v50, %v51
    %v53 = vrot.slane %v52, 2
    %v54 = vadd.f32 %v52, %v53
    %v55 = vrot.slane %v54, 1
    %v56 = vadd.f32 %v54, %v55
    %s57 = vtos %v56
    %v58 = vrcp.pop 2048.0
    %s59 = vtos %v58
    %s60 = smul.f32 %s57, %s59
    %s61 = scalar_lea.smem [#allocation7], 0
    %62 = sst [smem:[%s61]] %s60
    // Predicated region
    $region18: #{tpu_custom_call.1} parent=1 // pred_check
      _
    $region19: #{tpu_custom_call.1} parent=1 // pred_check_branch
      %64 = sbr.rel (0) target = $region21
    $region20: #{tpu_custom_call.1} parent=1 // pred_region
      %s66 = ssub.s32 16, 16
      %67 = vsyncadd [#allocation4], %s66
      %70 = dma.smem_to_hbm [#allocation7], 16, %s2, [#allocation4]
    $region21: #{tpu_custom_call.1} parent=1 // pred_fallthru
      _
    // Predicated region
    $region22: #{tpu_custom_call.1} parent=1 // pred_check
      _
    $region23: #{tpu_custom_call.1} parent=1 // pred_check_branch
      %72 = sbr.rel (0) target = $region25
    $region24: #{tpu_custom_call.1} parent=1 // pred_region
      %73 = dma.done [#allocation4], 16
    $region25: #{tpu_custom_call.1} parent=1 // pred_fallthru
      _
    %74 = sfence
    %75 = vsyncpa [#allocation3], 1
    %76 = vsyncpa [#allocation6], 1
    %77 = vsyncpa [#allocation4], 1

</llo_original>
